<compile_context>
chip_gen: v5e
topology: v5e:2x2
jax: 0.10.0
libtpu: 0.0.40
codegen_flags: <defaults>
</compile_context>

<pallas_src>
import jax
import jax.numpy as jnp
from jax.experimental import pallas as pl
from jax.experimental.pallas import tpu as pltpu


def gcn_kernel(a_ref, x_ref, w1_ref, b1_ref, w2_ref, b2_ref, scat_ref, out_ref):
    a = a_ref[...]                                            # (N, N) bf16

    # ---- GCNConv 1: h = relu((A_hat @ X) @ W1 + b1)  (F < H -> aggregate first) ----
    ax = jnp.dot(a, x_ref[...], preferred_element_type=jnp.float32)          # (N, F) f32
    h = jnp.dot(ax.astype(jnp.bfloat16), w1_ref[...],
                preferred_element_type=jnp.float32) + b1_ref[...]            # (N, H) f32
    h = jnp.maximum(h, 0.0)

    # ---- GCNConv 2: z = A_hat @ (h @ W2) + b2  (O < H -> project first) ----
    hw = jnp.dot(h.astype(jnp.bfloat16), w2_ref[...],
                 preferred_element_type=jnp.float32)                         # (N, O) f32
    z = jnp.dot(a, hw.astype(jnp.bfloat16),
                preferred_element_type=jnp.float32) + b2_ref[...]            # (N, O) f32

    # ---- decode: (z[src] * z[dst]).sum(-1), fused one-hot gather in one matmul ----
    z_cat = jnp.dot(scat_ref[...], z.astype(jnp.bfloat16),
                    preferred_element_type=jnp.float32)                      # (2*E_PAD, O)
    e_pad = out_ref.shape[1]
    p = z_cat[:e_pad] * z_cat[e_pad:]                                        # (E_PAD, O) f32
    # lane-dense (1, E_PAD) row: reduce over O with a ones-row matmul (MXU,
    # transposed-rhs form) instead of an XLU transpose of an (E, 1) column.
    ones_row = jnp.ones((1, p.shape[1]), jnp.float32)
    out_ref[...] = jnp.dot(ones_row, p.T, preferred_element_type=jnp.float32)


def gcn_forward(a_hat, x, w1, b1, w2, b2, edge_label_index):
    n = x.shape[0]
    e = edge_label_index.shape[1]
    e_pad = ((max(e, 1) + 127) // 128) * 128   # pad edge count to a lane multiple

    # Fused, lane-padded one-hot gather operand (padded rows are zero).
    s_cat = jnp.zeros((2 * e_pad, n), jnp.float32)
    s_cat = s_cat.at[jnp.arange(e), edge_label_index[0]].set(1.0)
    s_cat = s_cat.at[e_pad + jnp.arange(e), edge_label_index[1]].set(1.0)

    bf = jnp.bfloat16
    vmem_spec = pl.BlockSpec(memory_space=pltpu.MemorySpace.VMEM)

    out = pl.pallas_call(
        gcn_kernel,
        out_shape=jax.ShapeDtypeStruct((1, e_pad), jnp.float32),
        in_specs=[vmem_spec] * 7,
        out_specs=vmem_spec,
        compiler_params=pltpu.CompilerParams(vmem_limit_bytes=32 * 1024 * 1024),
    )(a_hat.astype(bf), x.astype(bf), w1.astype(bf), b1.astype(jnp.float32),
      w2.astype(bf), b2.astype(jnp.float32), s_cat.astype(bf))
    return out[0, :e]                                        # (E,)


def normalized_adjacency(edge_index, num_nodes):
    """PyG gcn_norm with add_self_loops=True: D^-1/2 (A + I) D^-1/2."""
    src, dst = edge_index[0], edge_index[1]
    a = jnp.zeros((num_nodes, num_nodes), jnp.float32)
    a = a.at[dst, src].add(1.0)          # row = aggregation target
    a = a + jnp.eye(num_nodes, dtype=jnp.float32)
    deg = a.sum(axis=1)
    dinv = jnp.where(deg > 0, 1.0 / jnp.sqrt(deg), 0.0)
    return dinv[:, None] * a * dinv[None, :]


def ref_forward(a_hat, x, w1, b1, w2, b2, edge_label_index):
    h = jnp.maximum(a_hat @ (x @ w1) + b1, 0.0)
    z = a_hat @ (h @ w2) + b2
    return (z[edge_label_index[0]] * z[edge_label_index[1]]).sum(axis=1)


if __name__ == "__main__":
    key = jax.random.PRNGKey(0)
    N, F, H, O = 16, 16, 64, 32          # nodes, num_features, conv1 out, conv2 out
    E_LABEL = 8

    k_x, k_w1, k_w2, k_e = jax.random.split(key, 4)

    # node features
    x = jax.random.normal(k_x, (N, F), dtype=jnp.float32)

    # undirected ring graph -> both edge directions present
    ring = jnp.arange(N, dtype=jnp.int32)
    src = jnp.concatenate([ring, (ring + 1) % N])
    dst = jnp.concatenate([(ring + 1) % N, ring])
    edge_index = jnp.stack([src, dst])                        # (2, 2N)

    # edge pairs to score
    edge_label_index = jax.random.randint(k_e, (2, E_LABEL), 0, N, dtype=jnp.int32)

    # GCNConv params (glorot-ish weights, zero bias like PyG defaults)
    w1 = jax.random.normal(k_w1, (F, H), dtype=jnp.float32) * (1.0 / jnp.sqrt(F))
    b1 = jnp.zeros((1, H), dtype=jnp.float32)
    w2 = jax.random.normal(k_w2, (H, O), dtype=jnp.float32) * (1.0 / jnp.sqrt(H))
    b2 = jnp.zeros((1, O), dtype=jnp.float32)

    a_hat = normalized_adjacency(edge_index, N)

    out = gcn_forward(a_hat, x, w1, b1, w2, b2, edge_label_index)
    out = jax.block_until_ready(out)

    ref = ref_forward(a_hat, x, w1, b1, w2, b2, edge_label_index)
    assert out.shape == (E_LABEL,)
    # bf16 MXU operands -> looser tolerance than the pure-f32 reference.
    assert jnp.allclose(out, ref, atol=5e-2, rtol=5e-2), (out, ref)

    print("KERNEL_OK")
</pallas_src>

<mosaic_0001>
module attributes {stable_mosaic.version = 11 : i64} {
  func.func @gcn_kernel(%arg0: memref<16x16xbf16, #tpu.memory_space<vmem>>, %arg1: memref<16x16xbf16, #tpu.memory_space<vmem>>, %arg2: memref<16x64xbf16, #tpu.memory_space<vmem>>, %arg3: memref<1x64xf32, #tpu.memory_space<vmem>>, %arg4: memref<64x32xbf16, #tpu.memory_space<vmem>>, %arg5: memref<1x32xf32, #tpu.memory_space<vmem>>, %arg6: memref<256x16xbf16, #tpu.memory_space<vmem>>, %arg7: memref<1x128xf32, #tpu.memory_space<vmem>>) attributes {dimension_semantics = [], scalar_prefetch = 0 : i64, scratch_operands = 0 : i64, tpu.core_type = #tpu.core_type<tc>} {
    %c0 = arith.constant 0 : index
    %c0_0 = arith.constant 0 : index
    %0 = vector.load %arg0[%c0, %c0_0] : memref<16x16xbf16, #tpu.memory_space<vmem>>, vector<16x16xbf16>
    %c0_1 = arith.constant 0 : index
    %c0_2 = arith.constant 0 : index
    %1 = vector.load %arg1[%c0_1, %c0_2] : memref<16x16xbf16, #tpu.memory_space<vmem>>, vector<16x16xbf16>
    %cst = arith.constant dense<0.000000e+00> : vector<16x16xf32>
    %2 = tpu.matmul %0, %1, %cst {dimension_numbers = #tpu.dot_dimension_numbers<[1], [0], [0], [1], [0, 0, 1, 1], [], []>} : vector<16x16xbf16>, vector<16x16xbf16>, vector<16x16xf32> -> vector<16x16xf32>
    %3 = arith.truncf %2 : vector<16x16xf32> to vector<16x16xbf16>
    %c0_3 = arith.constant 0 : index
    %c0_4 = arith.constant 0 : index
    %4 = vector.load %arg2[%c0_3, %c0_4] : memref<16x64xbf16, #tpu.memory_space<vmem>>, vector<16x64xbf16>
    %cst_5 = arith.constant dense<0.000000e+00> : vector<16x64xf32>
    %5 = tpu.matmul %3, %4, %cst_5 {dimension_numbers = #tpu.dot_dimension_numbers<[1], [0], [0], [1], [0, 0, 1, 1], [], []>} : vector<16x16xbf16>, vector<16x64xbf16>, vector<16x64xf32> -> vector<16x64xf32>
    %c0_6 = arith.constant 0 : index
    %c0_7 = arith.constant 0 : index
    %6 = vector.load %arg3[%c0_6, %c0_7] : memref<1x64xf32, #tpu.memory_space<vmem>>, vector<1x64xf32>
    %7 = vector.broadcast %6 : vector<1x64xf32> to vector<16x64xf32>
    %8 = arith.addf %5, %7 : vector<16x64xf32>
    %cst_8 = arith.constant 0.000000e+00 : f32
    %9 = vector.broadcast %cst_8 : f32 to vector<16x64xf32>
    %10 = arith.maximumf %8, %9 : vector<16x64xf32>
    %11 = arith.truncf %10 : vector<16x64xf32> to vector<16x64xbf16>
    %c0_9 = arith.constant 0 : index
    %c0_10 = arith.constant 0 : index
    %12 = vector.load %arg4[%c0_9, %c0_10] : memref<64x32xbf16, #tpu.memory_space<vmem>>, vector<64x32xbf16>
    %cst_11 = arith.constant dense<0.000000e+00> : vector<16x32xf32>
    %13 = tpu.matmul %11, %12, %cst_11 {dimension_numbers = #tpu.dot_dimension_numbers<[1], [0], [0], [1], [0, 0, 1, 1], [], []>} : vector<16x64xbf16>, vector<64x32xbf16>, vector<16x32xf32> -> vector<16x32xf32>
    %14 = arith.truncf %13 : vector<16x32xf32> to vector<16x32xbf16>
    %cst_12 = arith.constant dense<0.000000e+00> : vector<16x32xf32>
    %15 = tpu.matmul %0, %14, %cst_12 {dimension_numbers = #tpu.dot_dimension_numbers<[1], [0], [0], [1], [0, 0, 1, 1], [], []>} : vector<16x16xbf16>, vector<16x32xbf16>, vector<16x32xf32> -> vector<16x32xf32>
    %c0_13 = arith.constant 0 : index
    %c0_14 = arith.constant 0 : index
    %16 = vector.load %arg5[%c0_13, %c0_14] : memref<1x32xf32, #tpu.memory_space<vmem>>, vector<1x32xf32>
    %17 = vector.broadcast %16 : vector<1x32xf32> to vector<16x32xf32>
    %18 = arith.addf %15, %17 : vector<16x32xf32>
    %c0_15 = arith.constant 0 : index
    %c0_16 = arith.constant 0 : index
    %19 = vector.load %arg6[%c0_15, %c0_16] : memref<256x16xbf16, #tpu.memory_space<vmem>>, vector<256x16xbf16>
    %20 = arith.truncf %18 : vector<16x32xf32> to vector<16x32xbf16>
    %cst_17 = arith.constant dense<0.000000e+00> : vector<256x32xf32>
    %21 = tpu.matmul %19, %20, %cst_17 {dimension_numbers = #tpu.dot_dimension_numbers<[1], [0], [0], [1], [0, 0, 1, 1], [], []>} : vector<256x16xbf16>, vector<16x32xbf16>, vector<256x32xf32> -> vector<256x32xf32>
    %22 = vector.extract_strided_slice %21 {offsets = [0, 0], sizes = [128, 32], strides = [1, 1]} : vector<256x32xf32> to vector<128x32xf32>
    %23 = vector.extract_strided_slice %21 {offsets = [128, 0], sizes = [128, 32], strides = [1, 1]} : vector<256x32xf32> to vector<128x32xf32>
    %24 = arith.mulf %22, %23 : vector<128x32xf32>
    %cst_18 = arith.constant 1.000000e+00 : f32
    %25 = vector.broadcast %cst_18 : f32 to vector<1x32xf32>
    %26 = tpu.transpose %24, [1, 0] : vector<128x32xf32> -> vector<32x128xf32>
    %cst_19 = arith.constant dense<0.000000e+00> : vector<1x128xf32>
    %27 = tpu.matmul %25, %26, %cst_19 {dimension_numbers = #tpu.dot_dimension_numbers<[1], [0], [0], [1], [0, 0, 1, 1], [], []>} : vector<1x32xf32>, vector<32x128xf32>, vector<1x128xf32> -> vector<1x128xf32>
    %c0_20 = arith.constant 0 : index
    %c0_21 = arith.constant 0 : index
    %28 = vector.load %arg7[%c0_20, %c0_21] : memref<1x128xf32, #tpu.memory_space<vmem>>, vector<1x128xf32>
    tpu.vector_store %arg7[%c0_20, %c0_21], %27 {strides = array<i32>} : memref<1x128xf32, #tpu.memory_space<vmem>>, vector<1x128xf32>,
    return
  }
}

</mosaic_0001>

<llo_original>
// kernel: tpu_custom_call.1
$region0: #{tpu_custom_call.1}
  #allocation0 [shape = 'u32[]', space=smem, size = 0x4, offset = 0x4, fixed_abs, tag = 'smem constant byte address 0x4 - core index']
  #allocation1 [shape = 'u32[72,128]{1,0:T(1,128)}', space=vmem, size = 0x9000, scoped, tag = 'internal scratch']
  %s0 = inlined_call_operand.vmem [shape: bf16[16,16], index: 0, kind: input, shape index: {}]
  %s1 = inlined_call_operand.vmem [shape: bf16[16,16], index: 1, kind: input, shape index: {}]
  %s2 = inlined_call_operand.vmem [shape: bf16[16,64], index: 2, kind: input, shape index: {}]
  %s3 = inlined_call_operand.vmem [shape: f32[1,64], index: 3, kind: input, shape index: {}]
  %s4 = inlined_call_operand.vmem [shape: bf16[64,32], index: 4, kind: input, shape index: {}]
  %s5 = inlined_call_operand.vmem [shape: f32[1,32], index: 5, kind: input, shape index: {}]
  %s6 = inlined_call_operand.vmem [shape: bf16[256,16], index: 6, kind: input, shape index: {}]
  %s7 = inlined_call_operand.hbm [shape: f32[1,128], index: 7, kind: output, shape index: {}]
  %s8 = sld [smem:[#allocation0]]
  $region38: #{tpu_custom_call.1} parent=0
    _
  %s10 = ssub.s32 1, %s8
  %s11 = scalar_select 0, %s10, %s8
  $region1: #{tpu_custom_call.1} parent=0
    #allocation2 [shape = 'u8[512]{0}', space=vmem, size = 0x400, scoped, tag = 'output window, operand 0, single buffered']
    #allocation3 [shape = 's32[1]{0}', space=sflag, size = 0x4, scoped, tag = 'scoped memory for tpu_custom_call.1']
    %12 = vsyncpa [#allocation3], 0
    // Predicated region
    $region2: #{tpu_custom_call.1} parent=1 // pred_check
      _
    $region3: #{tpu_custom_call.1} parent=1 // pred_check_branch
      %14 = sbr.rel (0) target = $region5
    $region4: #{tpu_custom_call.1} parent=1 // pred_region
      _
    $region5: #{tpu_custom_call.1} parent=1 // pred_fallthru
      _
    // Predicated region
    $region6: #{tpu_custom_call.1} parent=1 // pred_check
      _
    $region7: #{tpu_custom_call.1} parent=1 // pred_check_branch
      %16 = sbr.rel (0) target = $region9
    $region8: #{tpu_custom_call.1} parent=1 // pred_region
      _
    $region9: #{tpu_custom_call.1} parent=1 // pred_fallthru
      _
    // Predicated region
    $region10: #{tpu_custom_call.1} parent=1 // pred_check
      _
    $region11: #{tpu_custom_call.1} parent=1 // pred_check_branch
      %18 = sbr.rel (0) target = $region13
    $region12: #{tpu_custom_call.1} parent=1 // pred_region
      _
    $region13: #{tpu_custom_call.1} parent=1 // pred_fallthru
      _
    // Predicated region
    $region14: #{tpu_custom_call.1} parent=1 // pred_check
      _
    $region15: #{tpu_custom_call.1} parent=1 // pred_check_branch
      %20 = sbr.rel (0) target = $region17
    $region16: #{tpu_custom_call.1} parent=1 // pred_region
      _
    $region17: #{tpu_custom_call.1} parent=1 // pred_fallthru
      _
    // Predicated region
    $region18: #{tpu_custom_call.1} parent=1 // pred_check
      _
    $region19: #{tpu_custom_call.1} parent=1 // pred_check_branch
      %22 = sbr.rel (0) target = $region21
    $region20: #{tpu_custom_call.1} parent=1 // pred_region
      _
    $region21: #{tpu_custom_call.1} parent=1 // pred_fallthru
      _
    // Predicated region
    $region22: #{tpu_custom_call.1} parent=1 // pred_check
      _
    $region23: #{tpu_custom_call.1} parent=1 // pred_check_branch
      %24 = sbr.rel (0) target = $region25
    $region24: #{tpu_custom_call.1} parent=1 // pred_region
      _
    $region25: #{tpu_custom_call.1} parent=1 // pred_fallthru
      _
    // Predicated region
    $region26: #{tpu_custom_call.1} parent=1 // pred_check
      _
    $region27: #{tpu_custom_call.1} parent=1 // pred_check_branch
      %26 = sbr.rel (0) target = $region29
    $region28: #{tpu_custom_call.1} parent=1 // pred_region
      _
    $region29: #{tpu_custom_call.1} parent=1 // pred_fallthru
      _
    %v28 = vld [vmem:[%s0] sm:$0xf]
    %v29 = vld [vmem:[%s0 + $0x4] sm:$0xf]
    %v30 = vld [vmem:[%s1] sm:$0xf]
    %v31 = vld [vmem:[%s1 + $0x4] sm:$0xf]
    %v34 = vunpack.c.l.b16 %v28
    %v35 = vunpack.c.l.b16 %v29
    %v36 = vpack.c.b16 %v35, %v34
    %v39 = vunpack.c.l.b16 %v30
    %v40 = vunpack.c.l.b16 %v31
    %v41 = vpack.c.b16 %v40, %v39
    %vm43 = vcmask 130048
    %v45 = vsel %vm43, %v36, 0
    %47 = vmatpush.bf16.msra.mxu0 0
    %48 = vmatpush.bf16.msra.mxu0 0
    %49 = vmatpush.bf16.msra.mxu0 0
    %50 = vmatpush.bf16.msra.mxu0 0
    %51 = vmatpush.bf16.msra.mxu0 0
    %52 = vmatpush.bf16.msra.mxu0 0
    %53 = vmatpush.bf16.msra.mxu0 0
    %54 = vmatpush.bf16.msra.mxu0 %v41
    %55 = vmatmul.bf16.gmra.mxu0 %v45
    %v56 = vpop.f32.mrf.mxu0
    %v57 = vadd.f32 0.0, %v56
    %v58 = vpop.f32.mrf.mxu0
    %v59 = vadd.f32 0.0, %v58
    %60 = vdwg.mxu0
    %v61 = vpack.c.bf16 %v59, %v57
    %v62 = vld [vmem:[%s2] sm:$0xf]
    %v63 = vld [vmem:[%s2 + $0x4] sm:$0xf]
    %v64 = vld [vmem:[%s3] sm:$0x1]
    %v66 = vperm.slane %v64, 0
    %v70 = vunpack.c.l.b16 %v62
    %v71 = vunpack.c.l.b16 %v63
    %v72 = vpack.c.b16 %v71, %v70
    %v75 = vsel %vm43, %v61, 0
    %77 = vmatpush.bf16.msra.mxu0 0
    %78 = vmatpush.bf16.msra.mxu0 0
    %79 = vmatpush.bf16.msra.mxu0 0
    %80 = vmatpush.bf16.msra.mxu0 0
    %81 = vmatpush.bf16.msra.mxu0 0
    %82 = vmatpush.bf16.msra.mxu0 0
    %83 = vmatpush.bf16.msra.mxu0 0
    %84 = vmatpush.bf16.msra.mxu0 %v72
    %85 = vmatmul.bf16.gmra.mxu0 %v75
    %v86 = vpop.f32.mrf.mxu0
    %v87 = vadd.f32 %v66, %v86
    %v88 = vpop.f32.mrf.mxu0
    %v89 = vadd.f32 %v66, %v88
    %90 = vdwg.mxu0
    %v91 = vmax.f32 %v87, 0.0
    %v92 = vmax.f32 %v89, 0.0
    %v93 = vpack.c.bf16 %v92, %v91
    %v94 = vld [vmem:[%s4] sm:$0xf]
    %v95 = vld [vmem:[%s4 + $0x4] sm:$0xf]
    %v96 = vld [vmem:[%s4 + $0x8] sm:$0xf]
    %v97 = vld [vmem:[%s4 + $0xc] sm:$0xf]
    %v98 = vld [vmem:[%s4 + $0x10] sm:$0xf]
    %v99 = vld [vmem:[%s4 + $0x14] sm:$0xf]
    %v100 = vld [vmem:[%s4 + $0x18] sm:$0xf]
    %v101 = vld [vmem:[%s4 + $0x1c] sm:$0xf]
    %v110 = vunpack.c.l.b16 %v94
    %v111 = vunpack.c.l.b16 %v95
    %v112 = vunpack.c.l.b16 %v96
    %v113 = vunpack.c.l.b16 %v97
    %v114 = vunpack.c.l.b16 %v98
    %v115 = vunpack.c.l.b16 %v99
    %v116 = vunpack.c.l.b16 %v100
    %v117 = vunpack.c.l.b16 %v101
    %v118 = vpack.c.b16 %v111, %v110
    %v119 = vpack.c.b16 %v113, %v112
    %v120 = vpack.c.b16 %v115, %v114
    %v121 = vpack.c.b16 %v117, %v116
    %vm126 = vcmask 523264
    %v128 = vsel %vm126, %v93, 0
    %130 = vmatpush.bf16.msra.mxu0 0
    %131 = vmatpush.bf16.msra.mxu0 0
    %132 = vmatpush.bf16.msra.mxu0 0
    %133 = vmatpush.bf16.msra.mxu0 0
    %134 = vmatpush.bf16.msra.mxu0 %v121
    %135 = vmatpush.bf16.msra.mxu0 %v120
    %136 = vmatpush.bf16.msra.mxu0 %v119
    %137 = vmatpush.bf16.msra.mxu0 %v118
    %138 = vmatmul.bf16.gmra.mxu0 %v128
    %v139 = vpop.f32.mrf.mxu0
    %v140 = vadd.f32 0.0, %v139
    %v141 = vpop.f32.mrf.mxu0
    %v142 = vadd.f32 0.0, %v141
    %143 = vdwg.mxu0
    %v144 = vpack.c.bf16 %v142, %v140
    %v145 = vld [vmem:[%s5] sm:$0x1]
    %v147 = vperm.slane %v145, 0
    %149 = vmatpush.bf16.msra.mxu0 0
    %150 = vmatpush.bf16.msra.mxu0 0
    %151 = vmatpush.bf16.msra.mxu0 0
    %152 = vmatpush.bf16.msra.mxu0 0
    %153 = vmatpush.bf16.msra.mxu0 0
    %154 = vmatpush.bf16.msra.mxu0 0
    %155 = vmatpush.bf16.msra.mxu0 0
    %156 = vmatpush.bf16.msra.mxu0 %v144
    %157 = vmatmul.bf16.gmra.mxu0 %v45
    %v158 = vpop.f32.mrf.mxu0
    %v159 = vadd.f32 %v147, %v158
    %v160 = vpop.f32.mrf.mxu0
    %v161 = vadd.f32 %v147, %v160
    %162 = vdwg.mxu0
    %v163 = vld [vmem:[%s6] sm:$0xf]
    %v164 = vld [vmem:[%s6 + $0x4] sm:$0xf]
    %v165 = vld [vmem:[%s6 + $0x8] sm:$0xf]
    %v166 = vld [vmem:[%s6 + $0xc] sm:$0xf]
    %v167 = vld [vmem:[%s6 + $0x10] sm:$0xf]
    %v168 = vld [vmem:[%s6 + $0x14] sm:$0xf]
    %v169 = vld [vmem:[%s6 + $0x18] sm:$0xf]
    %v170 = vld [vmem:[%s6 + $0x1c] sm:$0xf]
    %v171 = vld [vmem:[%s6 + $0x20] sm:$0xf]
    %v172 = vld [vmem:[%s6 + $0x24] sm:$0xf]
    %v173 = vld [vmem:[%s6 + $0x28] sm:$0xf]
    %v174 = vld [vmem:[%s6 + $0x2c] sm:$0xf]
    %v175 = vld [vmem:[%s6 + $0x30] sm:$0xf]
    %v176 = vld [vmem:[%s6 + $0x34] sm:$0xf]
    %v177 = vld [vmem:[%s6 + $0x38] sm:$0xf]
    %v178 = vld [vmem:[%s6 + $0x3c] sm:$0xf]
    %v179 = vld [vmem:[%s6 + $0x40] sm:$0xf]
    %v180 = vld [vmem:[%s6 + $0x44] sm:$0xf]
    %v181 = vld [vmem:[%s6 + $0x48] sm:$0xf]
    %v182 = vld [vmem:[%s6 + $0x4c] sm:$0xf]
    %v183 = vld [vmem:[%s6 + $0x50] sm:$0xf]
    %v184 = vld [vmem:[%s6 + $0x54] sm:$0xf]
    %v185 = vld [vmem:[%s6 + $0x58] sm:$0xf]
    %v186 = vld [vmem:[%s6 + $0x5c] sm:$0xf]
    %v187 = vld [vmem:[%s6 + $0x60] sm:$0xf]
    %v188 = vld [vmem:[%s6 + $0x64] sm:$0xf]
    %v189 = vld [vmem:[%s6 + $0x68] sm:$0xf]
    %v190 = vld [vmem:[%s6 + $0x6c] sm:$0xf]
    %v191 = vld [vmem:[%s6 + $0x70] sm:$0xf]
    %v192 = vld [vmem:[%s6 + $0x74] sm:$0xf]
    %v193 = vld [vmem:[%s6 + $0x78] sm:$0xf]
    %v194 = vld [vmem:[%s6 + $0x7c] sm:$0xf]
    %v195 = vpack.c.bf16 %v161, %v159
    %v228 = vunpack.c.l.b16 %v163
    %v229 = vunpack.c.l.b16 %v164
    %v230 = vunpack.c.l.b16 %v165
    %v231 = vunpack.c.l.b16 %v166
    %v232 = vunpack.c.l.b16 %v167
    %v233 = vunpack.c.l.b16 %v168
    %v234 = vunpack.c.l.b16 %v169
    %v235 = vunpack.c.l.b16 %v170
    %v236 = vunpack.c.l.b16 %v171
    %v237 = vunpack.c.l.b16 %v172
    %v238 = vunpack.c.l.b16 %v173
    %v239 = vunpack.c.l.b16 %v174
    %v240 = vunpack.c.l.b16 %v175
    %v241 = vunpack.c.l.b16 %v176
    %v242 = vunpack.c.l.b16 %v177
    %v243 = vunpack.c.l.b16 %v178
    %v244 = vunpack.c.l.b16 %v179
    %v245 = vunpack.c.l.b16 %v180
    %v246 = vunpack.c.l.b16 %v181
    %v247 = vunpack.c.l.b16 %v182
    %v248 = vunpack.c.l.b16 %v183
    %v249 = vunpack.c.l.b16 %v184
    %v250 = vunpack.c.l.b16 %v185
    %v251 = vunpack.c.l.b16 %v186
    %v252 = vunpack.c.l.b16 %v187
    %v253 = vunpack.c.l.b16 %v188
    %v254 = vunpack.c.l.b16 %v189
    %v255 = vunpack.c.l.b16 %v190
    %v256 = vunpack.c.l.b16 %v191
    %v257 = vunpack.c.l.b16 %v192
    %v258 = vunpack.c.l.b16 %v193
    %v259 = vunpack.c.l.b16 %v194
    %v260 = vpack.c.b16 %v229, %v228
    %v261 = vpack.c.b16 %v231, %v230
    %v262 = vpack.c.b16 %v233, %v232
    %v263 = vpack.c.b16 %v235, %v234
    %v264 = vpack.c.b16 %v237, %v236
    %v265 = vpack.c.b16 %v239, %v238
    %v266 = vpack.c.b16 %v241, %v240
    %v267 = vpack.c.b16 %v243, %v242
    %v268 = vpack.c.b16 %v245, %v244
    %v269 = vpack.c.b16 %v247, %v246
    %v270 = vpack.c.b16 %v249, %v248
    %v271 = vpack.c.b16 %v251, %v250
    %v272 = vpack.c.b16 %v253, %v252
    %v273 = vpack.c.b16 %v255, %v254
    %v274 = vpack.c.b16 %v257, %v256
    %v275 = vpack.c.b16 %v259, %v258
    %v277 = vsel %vm43, %v260, 0
    %v280 = vsel %vm43, %v261, 0
    %v283 = vsel %vm43, %v262, 0
    %v286 = vsel %vm43, %v263, 0
    %v289 = vsel %vm43, %v264, 0
    %v292 = vsel %vm43, %v265, 0
    %v295 = vsel %vm43, %v266, 0
    %v298 = vsel %vm43, %v267, 0
    %v301 = vsel %vm43, %v268, 0
    %v304 = vsel %vm43, %v269, 0
    %v307 = vsel %vm43, %v270, 0
    %v310 = vsel %vm43, %v271, 0
    %v313 = vsel %vm43, %v272, 0
    %v316 = vsel %vm43, %v273, 0
    %v319 = vsel %vm43, %v274, 0
    %v322 = vsel %vm43, %v275, 0
    %324 = vmatpush.bf16.msra.mxu0 0
    %325 = vmatpush.bf16.msra.mxu0 0
    %326 = vmatpush.bf16.msra.mxu0 0
    %327 = vmatpush.bf16.msra.mxu0 0
    %328 = vmatpush.bf16.msra.mxu0 0
    %329 = vmatpush.bf16.msra.mxu0 0
    %330 = vmatpush.bf16.msra.mxu0 0
    %331 = vmatpush.bf16.msra.mxu0 %v195
    %332 = vmatmul.bf16.gmra.mxu0 %v277
    %v333 = vpop.f32.mrf.mxu0
    %v334 = vadd.f32 0.0, %v333
    %v335 = vpop.f32.mrf.mxu0
    %v336 = vadd.f32 0.0, %v335
    %337 = vmatmul.bf16.gmra.mxu0 %v280
    %v338 = vpop.f32.mrf.mxu0
    %v339 = vadd.f32 0.0, %v338
    %v340 = vpop.f32.mrf.mxu0
    %v341 = vadd.f32 0.0, %v340
    %342 = vmatmul.bf16.gmra.mxu0 %v283
    %v343 = vpop.f32.mrf.mxu0
    %v344 = vadd.f32 0.0, %v343
    %v345 = vpop.f32.mrf.mxu0
    %v346 = vadd.f32 0.0, %v345
    %347 = vmatmul.bf16.gmra.mxu0 %v286
    %v348 = vpop.f32.mrf.mxu0
    %v349 = vadd.f32 0.0, %v348
    %v350 = vpop.f32.mrf.mxu0
    %v351 = vadd.f32 0.0, %v350
    %352 = vmatmul.bf16.gmra.mxu0 %v289
    %v353 = vpop.f32.mrf.mxu0
    %v354 = vadd.f32 0.0, %v353
    %v355 = vpop.f32.mrf.mxu0
    %v356 = vadd.f32 0.0, %v355
    %357 = vmatmul.bf16.gmra.mxu0 %v292
    %v358 = vpop.f32.mrf.mxu0
    %v359 = vadd.f32 0.0, %v358
    %v360 = vpop.f32.mrf.mxu0
    %v361 = vadd.f32 0.0, %v360
    %362 = vmatmul.bf16.gmra.mxu0 %v295
    %v363 = vpop.f32.mrf.mxu0
    %v364 = vadd.f32 0.0, %v363
    %v365 = vpop.f32.mrf.mxu0
    %v366 = vadd.f32 0.0, %v365
    %367 = vmatmul.bf16.gmra.mxu0 %v298
    %v368 = vpop.f32.mrf.mxu0
    %v369 = vadd.f32 0.0, %v368
    %v370 = vpop.f32.mrf.mxu0
    %v371 = vadd.f32 0.0, %v370
    %372 = vmatmul.bf16.gmra.mxu0 %v301
    %v373 = vpop.f32.mrf.mxu0
    %v374 = vadd.f32 0.0, %v373
    %v375 = vpop.f32.mrf.mxu0
    %v376 = vadd.f32 0.0, %v375
    %377 = vmatmul.bf16.gmra.mxu0 %v304
    %v378 = vpop.f32.mrf.mxu0
    %v379 = vadd.f32 0.0, %v378
    %v380 = vpop.f32.mrf.mxu0
    %v381 = vadd.f32 0.0, %v380
    %382 = vmatmul.bf16.gmra.mxu0 %v307
    %v383 = vpop.f32.mrf.mxu0
    %v384 = vadd.f32 0.0, %v383
    %v385 = vpop.f32.mrf.mxu0
    %v386 = vadd.f32 0.0, %v385
    %387 = vmatmul.bf16.gmra.mxu0 %v310
    %v388 = vpop.f32.mrf.mxu0
    %v389 = vadd.f32 0.0, %v388
    %v390 = vpop.f32.mrf.mxu0
    %v391 = vadd.f32 0.0, %v390
    %392 = vmatmul.bf16.gmra.mxu0 %v313
    %v393 = vpop.f32.mrf.mxu0
    %v394 = vadd.f32 0.0, %v393
    %v395 = vpop.f32.mrf.mxu0
    %v396 = vadd.f32 0.0, %v395
    %397 = vmatmul.bf16.gmra.mxu0 %v316
    %v398 = vpop.f32.mrf.mxu0
    %v399 = vadd.f32 0.0, %v398
    %v400 = vpop.f32.mrf.mxu0
    %v401 = vadd.f32 0.0, %v400
    %402 = vmatmul.bf16.gmra.mxu0 %v319
    %v403 = vpop.f32.mrf.mxu0
    %v404 = vadd.f32 0.0, %v403
    %v405 = vpop.f32.mrf.mxu0
    %v406 = vadd.f32 0.0, %v405
    %407 = vmatmul.bf16.gmra.mxu0 %v322
    %v408 = vpop.f32.mrf.mxu0
    %v409 = vadd.f32 0.0, %v408
    %v410 = vpop.f32.mrf.mxu0
    %v411 = vadd.f32 0.0, %v410
    %412 = vdwg.mxu0
    %v413 = vmul.f32 %v334, %v374
    %v414 = vmul.f32 %v336, %v376
    %v415 = vmul.f32 %v339, %v379
    %v416 = vmul.f32 %v341, %v381
    %v417 = vmul.f32 %v344, %v384
    %v418 = vmul.f32 %v346, %v386
    %v419 = vmul.f32 %v349, %v389
    %v420 = vmul.f32 %v351, %v391
    %v421 = vmul.f32 %v354, %v394
    %v422 = vmul.f32 %v356, %v396
    %v423 = vmul.f32 %v359, %v399
    %v424 = vmul.f32 %v361, %v401
    %v425 = vmul.f32 %v364, %v404
    %v426 = vmul.f32 %v366, %v406
    %v427 = vmul.f32 %v369, %v409
    %v428 = vmul.f32 %v371, %v411
    %vm429 = vcmask 261120
    %v431 = vsel %vm429, 1.0, 0
    %v434 = vsel %vm429, %v413, 0
    %v437 = vsel %vm429, %v414, 0
    %v440 = vsel %vm429, %v415, 0
    %v443 = vsel %vm429, %v416, 0
    %v446 = vsel %vm429, %v417, 0
    %v449 = vsel %vm429, %v418, 0
    %v452 = vsel %vm429, %v419, 0
    %v455 = vsel %vm429, %v420, 0
    %v458 = vsel %vm429, %v421, 0
    %v461 = vsel %vm429, %v422, 0
    %v464 = vsel %vm429, %v423, 0
    %v467 = vsel %vm429, %v424, 0
    %v470 = vsel %vm429, %v425, 0
    %v473 = vsel %vm429, %v426, 0
    %v476 = vsel %vm429, %v427, 0
    %v479 = vsel %vm429, %v428, 0
    %481 = vmatpush.xpose.msra.mxu0 %v479
    %482 = vmatpush.xpose.msra.mxu0 %v476
    %483 = vmatpush.xpose.msra.mxu0 %v473
    %484 = vmatpush.xpose.msra.mxu0 %v470
    %485 = vmatpush.xpose.msra.mxu0 %v467
    %486 = vmatpush.xpose.msra.mxu0 %v464
    %487 = vmatpush.xpose.msra.mxu0 %v461
    %488 = vmatpush.xpose.msra.mxu0 %v458
    %489 = vmatpush.xpose.msra.mxu0 %v455
    %490 = vmatpush.xpose.msra.mxu0 %v452
    %491 = vmatpush.xpose.msra.mxu0 %v449
    %492 = vmatpush.xpose.msra.mxu0 %v446
    %493 = vmatpush.xpose.msra.mxu0 %v443
    %494 = vmatpush.xpose.msra.mxu0 %v440
    %495 = vmatpush.xpose.msra.mxu0 %v437
    %496 = vmatpush.xpose.msra.mxu0 %v434
    %497 = vmatmul.f32.gmra.mxu0 %v431
    %v498 = vpop.f32.mrf.mxu0
    %v499 = vadd.f32 0.0, %v498
    %500 = vdwg.mxu0
    %501 = vst [vmem:[#allocation2] sm:$0x1] %v499
    // Predicated region
    $region30: #{tpu_custom_call.1} parent=1 // pred_check
      _
    $region31: #{tpu_custom_call.1} parent=1 // pred_check_branch
      %503 = sbr.rel (0) target = $region33
    $region32: #{tpu_custom_call.1} parent=1 // pred_region
      %505 = vsyncadd [#allocation3], 0
      %s507 = sshll.u32 [#allocation2], 4
      %s508 = int_to_ptr.vmem [resolvable:$true] %s507
      %s509 = sshll.u32 %s7, 4
      %s510 = int_to_ptr.hbm [resolvable:$true] %s509
      %512 = dma.vmem_to_hbm [thread:$0]  %s508, 16, %s510, [#allocation3]
    $region33: #{tpu_custom_call.1} parent=1 // pred_fallthru
      _
    // Predicated region
    $region34: #{tpu_custom_call.1} parent=1 // pred_check
      _
    $region35: #{tpu_custom_call.1} parent=1 // pred_check_branch
      %514 = sbr.rel (0) target = $region37
    $region36: #{tpu_custom_call.1} parent=1 // pred_region
      %516 = dma.done [#allocation3], 16
    $region37: #{tpu_custom_call.1} parent=1 // pred_fallthru
      _
    %517 = vsyncpa [#allocation3], 1

</llo_original>
